<compile_context>
chip_gen: v7x
topology: tpu7x:2x2x1
jax: 0.10.0
libtpu: 0.0.40
codegen_flags: <defaults>
</compile_context>

<pallas_src>
import jax
import jax.numpy as jnp
from jax.experimental import pallas as pl
from jax.experimental.pallas import tpu as pltpu

STATE_SIZE = 3
ACTION_SIZE = 6
HIDDEN = 64


def qnetwork_kernel(x_ref,
                    w1_ref, b1_ref,
                    w2_ref, b2_ref,
                    w3_ref, b3_ref,
                    w4_ref, b4_ref,
                    w5_ref, b5_ref,
                    o_ref):
    # fc1 (K=3): three broadcast FMAs on the VPU -- cheaper than an MXU matmul whose
    # contraction dim would be zero-padded 3 -> 8.
    x = x_ref[...]                                    # (tb, 3)
    w1 = w1_ref[...]                                  # (3, 64)
    h = (x[:, 0:1] * w1[0:1, :]
         + x[:, 1:2] * w1[1:2, :]
         + x[:, 2:3] * w1[2:3, :]
         + b1_ref[...])
    h = jnp.maximum(h, 0.0)

    # fc2..fc4 + relu (MXU, f32 accumulation)
    h = jnp.maximum(
        jnp.dot(h, w2_ref[...], preferred_element_type=jnp.float32) + b2_ref[...], 0.0)
    h = jnp.maximum(
        jnp.dot(h, w3_ref[...], preferred_element_type=jnp.float32) + b3_ref[...], 0.0)
    h = jnp.maximum(
        jnp.dot(h, w4_ref[...], preferred_element_type=jnp.float32) + b4_ref[...], 0.0)

    # fc5 (no activation): true 6-wide output -> minimal HBM writeback, no padding FLOPs.
    out = jnp.dot(h, w5_ref[...], preferred_element_type=jnp.float32) + b5_ref[...]
    o_ref[...] = out.astype(o_ref.dtype)


def qnetwork_forward(state, params, *, tile_b=2048):
    """state: (B, 3) f32. params: dict of (in, out) weights / (1, out) biases.
    Returns (B, 6) Q-values."""
    B = state.shape[0]

    def rup(x, m):
        return -(-x // m) * m

    # Batch tile: multiple of 8 sublanes, no larger than the (padded-up) batch.
    tb = max(8, min((tile_b // 8) * 8, rup(B, 8)))
    # Guarantee >= 2 grid steps when the batch allows it (uses both TCs on v7x via the
    # "parallel" axis; harmless on single-TC generations).
    half = rup(-(-B // 2), 8)
    if B > 8 and half < tb:
        tb = half

    Bp = rup(B, tb)
    if Bp != B:
        state = jnp.pad(state, ((0, Bp - B), (0, 0)))
    grid = (Bp // tb,)

    def resident(shape):
        # Full-shape block, constant block index: fetched once, pinned in VMEM.
        return pl.BlockSpec(shape, lambda i: (0, 0))

    weight_names = ("w1", "b1", "w2", "b2", "w3", "b3", "w4", "b4", "w5", "b5")
    in_specs = [pl.BlockSpec((tb, STATE_SIZE), lambda i: (i, 0))]
    in_specs += [resident(params[k].shape) for k in weight_names]

    flops = 2 * Bp * (STATE_SIZE * HIDDEN + 3 * HIDDEN * HIDDEN + HIDDEN * ACTION_SIZE)
    weight_bytes = sum(int(params[k].size) * 4 for k in weight_names)
    bytes_accessed = Bp * STATE_SIZE * 4 + Bp * ACTION_SIZE * 4 + weight_bytes

    out = pl.pallas_call(
        qnetwork_kernel,
        out_shape=jax.ShapeDtypeStruct((Bp, ACTION_SIZE), jnp.float32),
        grid=grid,
        in_specs=in_specs,
        out_specs=pl.BlockSpec((tb, ACTION_SIZE), lambda i: (i, 0)),
        compiler_params=pltpu.CompilerParams(
            dimension_semantics=("parallel",)),
        cost_estimate=pl.CostEstimate(
            flops=flops, transcendentals=0, bytes_accessed=bytes_accessed),
    )(state, *[params[k] for k in weight_names])

    return out[:B] if Bp != B else out


def init_params(key):
    """Deterministic init mimicking PyTorch Linear's U(-1/sqrt(fan_in), 1/sqrt(fan_in)).
    Weights stored as (in, out) == PyTorch weight.T; biases as (1, out)."""
    dims = [(STATE_SIZE, HIDDEN), (HIDDEN, HIDDEN), (HIDDEN, HIDDEN),
            (HIDDEN, HIDDEN), (HIDDEN, ACTION_SIZE)]
    params = {}
    for i, (fan_in, fan_out) in enumerate(dims, start=1):
        key, kw, kb = jax.random.split(key, 3)
        bound = 1.0 / (fan_in ** 0.5)
        params[f"w{i}"] = jax.random.uniform(kw, (fan_in, fan_out), jnp.float32,
                                             minval=-bound, maxval=bound)
        params[f"b{i}"] = jax.random.uniform(kb, (1, fan_out), jnp.float32,
                                             minval=-bound, maxval=bound)
    return params


def reference_forward(state, params):
    h = state
    for i in range(1, 5):
        h = jnp.maximum(h @ params[f"w{i}"] + params[f"b{i}"], 0.0)
    return h @ params["w5"] + params["b5"]


if __name__ == "__main__":
    key = jax.random.PRNGKey(0)
    kp, kx1, kx2 = jax.random.split(key, 3)
    params = init_params(kp)

    # Small batch (single tile).
    batch = 8
    state = jax.random.normal(kx1, (batch, STATE_SIZE), jnp.float32)
    out = jax.block_until_ready(qnetwork_forward(state, params))
    ref = reference_forward(state, params)
    assert out.shape == (batch, ACTION_SIZE)
    assert jnp.allclose(out, ref, atol=1e-5, rtol=1e-5), "mismatch vs JAX reference (small batch)"

    # Ragged batch with the default (large) tile: exercises the >=2-grid-step cap
    # (tb=152, Bp=304, grid=2) plus batch padding.
    batch2 = 300
    state2 = jax.random.normal(kx2, (batch2, STATE_SIZE), jnp.float32)
    out2 = jax.block_until_ready(qnetwork_forward(state2, params))
    ref2 = reference_forward(state2, params)
    assert out2.shape == (batch2, ACTION_SIZE)
    assert jnp.allclose(out2, ref2, atol=1e-5, rtol=1e-5), "mismatch vs JAX reference (2-step grid)"

    # Same batch with an explicit small tile: exercises a 3-step pipelined grid.
    out3 = jax.block_until_ready(qnetwork_forward(state2, params, tile_b=128))
    assert out3.shape == (batch2, ACTION_SIZE)
    assert jnp.allclose(out3, ref2, atol=1e-5, rtol=1e-5), "mismatch vs JAX reference (tiled batch)"

    print("KERNEL_OK")
</pallas_src>

<mosaic_0001>
module attributes {stable_mosaic.version = 11 : i64} {
  func.func @qnetwork_kernel(%arg0: i32, %arg1: memref<8x3xf32, #tpu.memory_space<vmem>>, %arg2: memref<3x64xf32, #tpu.memory_space<vmem>>, %arg3: memref<1x64xf32, #tpu.memory_space<vmem>>, %arg4: memref<64x64xf32, #tpu.memory_space<vmem>>, %arg5: memref<1x64xf32, #tpu.memory_space<vmem>>, %arg6: memref<64x64xf32, #tpu.memory_space<vmem>>, %arg7: memref<1x64xf32, #tpu.memory_space<vmem>>, %arg8: memref<64x64xf32, #tpu.memory_space<vmem>>, %arg9: memref<1x64xf32, #tpu.memory_space<vmem>>, %arg10: memref<64x6xf32, #tpu.memory_space<vmem>>, %arg11: memref<1x6xf32, #tpu.memory_space<vmem>>, %arg12: memref<8x6xf32, #tpu.memory_space<vmem>>) attributes {dimension_semantics = [#tpu.dimension_semantics<parallel>], iteration_bounds = array<i64: 1>, scalar_prefetch = 0 : i64, scratch_operands = 0 : i64, tpu.core_type = #tpu.core_type<tc>, window_params = [{transform_indices = @transform_0, window_bounds = array<i64: 8, 3>}, {pipeline_mode = #tpu.pipeline_mode<synchronous>, transform_indices = @transform_1, window_bounds = array<i64: 3, 64>}, {pipeline_mode = #tpu.pipeline_mode<synchronous>, transform_indices = @transform_2, window_bounds = array<i64: 1, 64>}, {pipeline_mode = #tpu.pipeline_mode<synchronous>, transform_indices = @transform_3, window_bounds = array<i64: 64, 64>}, {pipeline_mode = #tpu.pipeline_mode<synchronous>, transform_indices = @transform_4, window_bounds = array<i64: 1, 64>}, {pipeline_mode = #tpu.pipeline_mode<synchronous>, transform_indices = @transform_5, window_bounds = array<i64: 64, 64>}, {pipeline_mode = #tpu.pipeline_mode<synchronous>, transform_indices = @transform_6, window_bounds = array<i64: 1, 64>}, {pipeline_mode = #tpu.pipeline_mode<synchronous>, transform_indices = @transform_7, window_bounds = array<i64: 64, 64>}, {pipeline_mode = #tpu.pipeline_mode<synchronous>, transform_indices = @transform_8, window_bounds = array<i64: 1, 64>}, {pipeline_mode = #tpu.pipeline_mode<synchronous>, transform_indices = @transform_9, window_bounds = array<i64: 64, 6>}, {pipeline_mode = #tpu.pipeline_mode<synchronous>, transform_indices = @transform_10, window_bounds = array<i64: 1, 6>}, {transform_indices = @transform_11, window_bounds = array<i64: 8, 6>}]} {
    %c0 = arith.constant 0 : index
    %c0_0 = arith.constant 0 : index
    %0 = vector.load %arg1[%c0, %c0_0] : memref<8x3xf32, #tpu.memory_space<vmem>>, vector<8x3xf32>
    %c0_1 = arith.constant 0 : index
    %c0_2 = arith.constant 0 : index
    %1 = vector.load %arg2[%c0_1, %c0_2] : memref<3x64xf32, #tpu.memory_space<vmem>>, vector<3x64xf32>
    %2 = vector.extract_strided_slice %0 {offsets = [0, 0], sizes = [8, 1], strides = [1, 1]} : vector<8x3xf32> to vector<8x1xf32>
    %3 = vector.extract_strided_slice %1 {offsets = [0, 0], sizes = [1, 64], strides = [1, 1]} : vector<3x64xf32> to vector<1x64xf32>
    %4 = vector.broadcast %2 : vector<8x1xf32> to vector<8x64xf32>
    %5 = vector.broadcast %3 : vector<1x64xf32> to vector<8x64xf32>
    %6 = arith.mulf %4, %5 : vector<8x64xf32>
    %7 = vector.extract_strided_slice %0 {offsets = [0, 1], sizes = [8, 1], strides = [1, 1]} : vector<8x3xf32> to vector<8x1xf32>
    %8 = vector.extract_strided_slice %1 {offsets = [1, 0], sizes = [1, 64], strides = [1, 1]} : vector<3x64xf32> to vector<1x64xf32>
    %9 = vector.broadcast %7 : vector<8x1xf32> to vector<8x64xf32>
    %10 = vector.broadcast %8 : vector<1x64xf32> to vector<8x64xf32>
    %11 = arith.mulf %9, %10 : vector<8x64xf32>
    %12 = arith.addf %6, %11 : vector<8x64xf32>
    %13 = vector.extract_strided_slice %0 {offsets = [0, 2], sizes = [8, 1], strides = [1, 1]} : vector<8x3xf32> to vector<8x1xf32>
    %14 = vector.extract_strided_slice %1 {offsets = [2, 0], sizes = [1, 64], strides = [1, 1]} : vector<3x64xf32> to vector<1x64xf32>
    %15 = vector.broadcast %13 : vector<8x1xf32> to vector<8x64xf32>
    %16 = vector.broadcast %14 : vector<1x64xf32> to vector<8x64xf32>
    %17 = arith.mulf %15, %16 : vector<8x64xf32>
    %18 = arith.addf %12, %17 : vector<8x64xf32>
    %c0_3 = arith.constant 0 : index
    %c0_4 = arith.constant 0 : index
    %19 = vector.load %arg3[%c0_3, %c0_4] : memref<1x64xf32, #tpu.memory_space<vmem>>, vector<1x64xf32>
    %20 = vector.broadcast %19 : vector<1x64xf32> to vector<8x64xf32>
    %21 = arith.addf %18, %20 : vector<8x64xf32>
    %cst = arith.constant 0.000000e+00 : f32
    %22 = vector.broadcast %cst : f32 to vector<8x64xf32>
    %23 = arith.maximumf %21, %22 : vector<8x64xf32>
    %c0_5 = arith.constant 0 : index
    %c0_6 = arith.constant 0 : index
    %24 = vector.load %arg4[%c0_5, %c0_6] : memref<64x64xf32, #tpu.memory_space<vmem>>, vector<64x64xf32>
    %cst_7 = arith.constant dense<0.000000e+00> : vector<8x64xf32>
    %25 = tpu.matmul %23, %24, %cst_7 {dimension_numbers = #tpu.dot_dimension_numbers<[1], [0], [0], [1], [0, 0, 1, 1], [], []>} : vector<8x64xf32>, vector<64x64xf32>, vector<8x64xf32> -> vector<8x64xf32>
    %c0_8 = arith.constant 0 : index
    %c0_9 = arith.constant 0 : index
    %26 = vector.load %arg5[%c0_8, %c0_9] : memref<1x64xf32, #tpu.memory_space<vmem>>, vector<1x64xf32>
    %27 = vector.broadcast %26 : vector<1x64xf32> to vector<8x64xf32>
    %28 = arith.addf %25, %27 : vector<8x64xf32>
    %cst_10 = arith.constant 0.000000e+00 : f32
    %29 = vector.broadcast %cst_10 : f32 to vector<8x64xf32>
    %30 = arith.maximumf %28, %29 : vector<8x64xf32>
    %c0_11 = arith.constant 0 : index
    %c0_12 = arith.constant 0 : index
    %31 = vector.load %arg6[%c0_11, %c0_12] : memref<64x64xf32, #tpu.memory_space<vmem>>, vector<64x64xf32>
    %cst_13 = arith.constant dense<0.000000e+00> : vector<8x64xf32>
    %32 = tpu.matmul %30, %31, %cst_13 {dimension_numbers = #tpu.dot_dimension_numbers<[1], [0], [0], [1], [0, 0, 1, 1], [], []>} : vector<8x64xf32>, vector<64x64xf32>, vector<8x64xf32> -> vector<8x64xf32>
    %c0_14 = arith.constant 0 : index
    %c0_15 = arith.constant 0 : index
    %33 = vector.load %arg7[%c0_14, %c0_15] : memref<1x64xf32, #tpu.memory_space<vmem>>, vector<1x64xf32>
    %34 = vector.broadcast %33 : vector<1x64xf32> to vector<8x64xf32>
    %35 = arith.addf %32, %34 : vector<8x64xf32>
    %cst_16 = arith.constant 0.000000e+00 : f32
    %36 = vector.broadcast %cst_16 : f32 to vector<8x64xf32>
    %37 = arith.maximumf %35, %36 : vector<8x64xf32>
    %c0_17 = arith.constant 0 : index
    %c0_18 = arith.constant 0 : index
    %38 = vector.load %arg8[%c0_17, %c0_18] : memref<64x64xf32, #tpu.memory_space<vmem>>, vector<64x64xf32>
    %cst_19 = arith.constant dense<0.000000e+00> : vector<8x64xf32>
    %39 = tpu.matmul %37, %38, %cst_19 {dimension_numbers = #tpu.dot_dimension_numbers<[1], [0], [0], [1], [0, 0, 1, 1], [], []>} : vector<8x64xf32>, vector<64x64xf32>, vector<8x64xf32> -> vector<8x64xf32>
    %c0_20 = arith.constant 0 : index
    %c0_21 = arith.constant 0 : index
    %40 = vector.load %arg9[%c0_20, %c0_21] : memref<1x64xf32, #tpu.memory_space<vmem>>, vector<1x64xf32>
    %41 = vector.broadcast %40 : vector<1x64xf32> to vector<8x64xf32>
    %42 = arith.addf %39, %41 : vector<8x64xf32>
    %cst_22 = arith.constant 0.000000e+00 : f32
    %43 = vector.broadcast %cst_22 : f32 to vector<8x64xf32>
    %44 = arith.maximumf %42, %43 : vector<8x64xf32>
    %c0_23 = arith.constant 0 : index
    %c0_24 = arith.constant 0 : index
    %45 = vector.load %arg10[%c0_23, %c0_24] : memref<64x6xf32, #tpu.memory_space<vmem>>, vector<64x6xf32>
    %cst_25 = arith.constant dense<0.000000e+00> : vector<8x6xf32>
    %46 = tpu.matmul %44, %45, %cst_25 {dimension_numbers = #tpu.dot_dimension_numbers<[1], [0], [0], [1], [0, 0, 1, 1], [], []>} : vector<8x64xf32>, vector<64x6xf32>, vector<8x6xf32> -> vector<8x6xf32>
    %c0_26 = arith.constant 0 : index
    %c0_27 = arith.constant 0 : index
    %47 = vector.load %arg11[%c0_26, %c0_27] : memref<1x6xf32, #tpu.memory_space<vmem>>, vector<1x6xf32>
    %48 = vector.broadcast %47 : vector<1x6xf32> to vector<8x6xf32>
    %49 = arith.addf %46, %48 : vector<8x6xf32>
    %c0_28 = arith.constant 0 : index
    %c0_29 = arith.constant 0 : index
    %50 = vector.load %arg12[%c0_28, %c0_29] : memref<8x6xf32, #tpu.memory_space<vmem>>, vector<8x6xf32>
    tpu.vector_store %arg12[%c0_28, %c0_29], %49 {strides = array<i32>} : memref<8x6xf32, #tpu.memory_space<vmem>>, vector<8x6xf32>,
    return
  }
  func.func @transform_0(%arg0: i32) -> (i32, i32) {
    %c0_i32 = arith.constant 0 : i32
    %c0_i32_0 = arith.constant 0 : i32
    return %arg0, %c0_i32 : i32, i32
  }
  func.func @transform_1(%arg0: i32) -> (i32, i32) {
    %c0_i32 = arith.constant 0 : i32
    %c0_i32_0 = arith.constant 0 : i32
    %c0_i32_1 = arith.constant 0 : i32
    return %c0_i32, %c0_i32_0 : i32, i32
  }
  func.func @transform_2(%arg0: i32) -> (i32, i32) {
    %c0_i32 = arith.constant 0 : i32
    %c0_i32_0 = arith.constant 0 : i32
    %c0_i32_1 = arith.constant 0 : i32
    return %c0_i32, %c0_i32_0 : i32, i32
  }
  func.func @transform_3(%arg0: i32) -> (i32, i32) {
    %c0_i32 = arith.constant 0 : i32
    %c0_i32_0 = arith.constant 0 : i32
    %c0_i32_1 = arith.constant 0 : i32
    return %c0_i32, %c0_i32_0 : i32, i32
  }
  func.func @transform_4(%arg0: i32) -> (i32, i32) {
    %c0_i32 = arith.constant 0 : i32
    %c0_i32_0 = arith.constant 0 : i32
    %c0_i32_1 = arith.constant 0 : i32
    return %c0_i32, %c0_i32_0 : i32, i32
  }
  func.func @transform_5(%arg0: i32) -> (i32, i32) {
    %c0_i32 = arith.constant 0 : i32
    %c0_i32_0 = arith.constant 0 : i32
    %c0_i32_1 = arith.constant 0 : i32
    return %c0_i32, %c0_i32_0 : i32, i32
  }
  func.func @transform_6(%arg0: i32) -> (i32, i32) {
    %c0_i32 = arith.constant 0 : i32
    %c0_i32_0 = arith.constant 0 : i32
    %c0_i32_1 = arith.constant 0 : i32
    return %c0_i32, %c0_i32_0 : i32, i32
  }
  func.func @transform_7(%arg0: i32) -> (i32, i32) {
    %c0_i32 = arith.constant 0 : i32
    %c0_i32_0 = arith.constant 0 : i32
    %c0_i32_1 = arith.constant 0 : i32
    return %c0_i32, %c0_i32_0 : i32, i32
  }
  func.func @transform_8(%arg0: i32) -> (i32, i32) {
    %c0_i32 = arith.constant 0 : i32
    %c0_i32_0 = arith.constant 0 : i32
    %c0_i32_1 = arith.constant 0 : i32
    return %c0_i32, %c0_i32_0 : i32, i32
  }
  func.func @transform_9(%arg0: i32) -> (i32, i32) {
    %c0_i32 = arith.constant 0 : i32
    %c0_i32_0 = arith.constant 0 : i32
    %c0_i32_1 = arith.constant 0 : i32
    return %c0_i32, %c0_i32_0 : i32, i32
  }
  func.func @transform_10(%arg0: i32) -> (i32, i32) {
    %c0_i32 = arith.constant 0 : i32
    %c0_i32_0 = arith.constant 0 : i32
    %c0_i32_1 = arith.constant 0 : i32
    return %c0_i32, %c0_i32_0 : i32, i32
  }
  func.func @transform_11(%arg0: i32) -> (i32, i32) {
    %c0_i32 = arith.constant 0 : i32
    %c0_i32_0 = arith.constant 0 : i32
    return %arg0, %c0_i32 : i32, i32
  }
}

</mosaic_0001>

<llo_original>
// kernel: tpu_custom_call.1
$region0: #{tpu_custom_call.1}
  #allocation0 [shape = 'u32[]', space=smem, size = 0x4, offset = 0x4, fixed_abs, tag = 'smem constant byte address 0x4 - core index']
  #allocation1 [shape = 'u32[144,128]{1,0:T(1,128)}', space=vmem, size = 0x12000, scoped, tag = 'internal scratch']
  %s0 = inlined_call_operand.vmem [shape: f32[8,3], index: 0, kind: input, shape index: {}]
  %s1 = inlined_call_operand.vmem [shape: f32[3,64], index: 1, kind: input, shape index: {}]
  %s2 = inlined_call_operand.vmem [shape: f32[1,64], index: 2, kind: input, shape index: {}]
  %s3 = inlined_call_operand.vmem [shape: f32[64,64], index: 3, kind: input, shape index: {}]
  %s4 = inlined_call_operand.vmem [shape: f32[1,64], index: 4, kind: input, shape index: {}]
  %s5 = inlined_call_operand.hbm [shape: f32[64,64], index: 5, kind: input, shape index: {}]
  %s6 = inlined_call_operand.vmem [shape: f32[1,64], index: 6, kind: input, shape index: {}]
  %s7 = inlined_call_operand.hbm [shape: f32[64,64], index: 7, kind: input, shape index: {}]
  %s8 = inlined_call_operand.vmem [shape: f32[1,64], index: 8, kind: input, shape index: {}]
  %s9 = inlined_call_operand.vmem [shape: f32[64,6], index: 9, kind: input, shape index: {}]
  %s10 = inlined_call_operand.vmem [shape: f32[1,6], index: 10, kind: input, shape index: {}]
  %s11 = inlined_call_operand.hbm [shape: f32[8,6], index: 11, kind: output, shape index: {}]
  %s12 = sld [smem:[#allocation0]]
  $region62: #{tpu_custom_call.1} parent=0
    _
  %s14 = ssub.s32 1, %s12
  %s15 = scalar_select 0, %s14, %s12
  $region1: #{tpu_custom_call.1} parent=0
    #allocation2 [shape = 'u8[32768]{0}', space=vmem, size = 0x8000, scoped, tag = 'input window, operand 5, single buffered']
    #allocation3 [shape = 's32[1]{0}', space=sflag, size = 0x4, scoped, tag = 'scoped memory for tpu_custom_call.1']
    #allocation4 [shape = 's32[1]{0}', space=sflag, size = 0x4, scoped, tag = 'scoped memory for tpu_custom_call.1']
    #allocation5 [shape = 'u8[32768]{0}', space=vmem, size = 0x8000, scoped, tag = 'input window, operand 7, single buffered']
    #allocation6 [shape = 's32[1]{0}', space=sflag, size = 0x4, scoped, tag = 'scoped memory for tpu_custom_call.1']
    #allocation7 [shape = 'u8[4096]{0}', space=vmem, size = 0x1000, scoped, tag = 'output window, operand 0, single buffered']
    %16 = vsyncpa [#allocation3], 0
    %17 = vsyncpa [#allocation6], 0
    %18 = vsyncpa [#allocation4], 0
    // Predicated region
    $region2: #{tpu_custom_call.1} parent=1 // pred_check
      _
    $region3: #{tpu_custom_call.1} parent=1 // pred_check_branch
      %20 = sbr.rel (0) target = $region5
    $region4: #{tpu_custom_call.1} parent=1 // pred_region
      _
    $region5: #{tpu_custom_call.1} parent=1 // pred_fallthru
      _
    // Predicated region
    $region6: #{tpu_custom_call.1} parent=1 // pred_check
      _
    $region7: #{tpu_custom_call.1} parent=1 // pred_check_branch
      %22 = sbr.rel (0) target = $region9
    $region8: #{tpu_custom_call.1} parent=1 // pred_region
      _
    $region9: #{tpu_custom_call.1} parent=1 // pred_fallthru
      _
    // Predicated region
    $region10: #{tpu_custom_call.1} parent=1 // pred_check
      _
    $region11: #{tpu_custom_call.1} parent=1 // pred_check_branch
      %24 = sbr.rel (0) target = $region13
    $region12: #{tpu_custom_call.1} parent=1 // pred_region
      _
    $region13: #{tpu_custom_call.1} parent=1 // pred_fallthru
      _
    // Predicated region
    $region14: #{tpu_custom_call.1} parent=1 // pred_check
      _
    $region15: #{tpu_custom_call.1} parent=1 // pred_check_branch
      %26 = sbr.rel (0) target = $region17
    $region16: #{tpu_custom_call.1} parent=1 // pred_region
      _
    $region17: #{tpu_custom_call.1} parent=1 // pred_fallthru
      _
    // Predicated region
    $region18: #{tpu_custom_call.1} parent=1 // pred_check
      _
    $region19: #{tpu_custom_call.1} parent=1 // pred_check_branch
      %28 = sbr.rel (0) target = $region21
    $region20: #{tpu_custom_call.1} parent=1 // pred_region
      _
    $region21: #{tpu_custom_call.1} parent=1 // pred_fallthru
      _
    // Predicated region
    $region22: #{tpu_custom_call.1} parent=1 // pred_check
      _
    $region23: #{tpu_custom_call.1} parent=1 // pred_check_branch
      %30 = sbr.rel (0) target = $region25
    $region24: #{tpu_custom_call.1} parent=1 // pred_region
      %s32 = ssub.s32 1024, 1024
      %33 = vsyncadd [#allocation3], %s32
      %s34 = sshll.u32 [#allocation2], 4
      %s35 = int_to_ptr.vmem [resolvable:$true] %s34
      %40 = dma.hbm_to_vmem [thread:$0]  %s5, 1024, %s35, [#allocation3], 128, 128, 8
    $region25: #{tpu_custom_call.1} parent=1 // pred_fallthru
      _
    // Predicated region
    $region26: #{tpu_custom_call.1} parent=1 // pred_check
      _
    $region27: #{tpu_custom_call.1} parent=1 // pred_check_branch
      %42 = sbr.rel (0) target = $region29
    $region28: #{tpu_custom_call.1} parent=1 // pred_region
      _
    $region29: #{tpu_custom_call.1} parent=1 // pred_fallthru
      _
    // Predicated region
    $region30: #{tpu_custom_call.1} parent=1 // pred_check
      _
    $region31: #{tpu_custom_call.1} parent=1 // pred_check_branch
      %44 = sbr.rel (0) target = $region33
    $region32: #{tpu_custom_call.1} parent=1 // pred_region
      %s46 = ssub.s32 1024, 1024
      %47 = vsyncadd [#allocation6], %s46
      %s48 = sshll.u32 [#allocation5], 4
      %s49 = int_to_ptr.vmem [resolvable:$true] %s48
      %54 = dma.hbm_to_vmem [thread:$0]  %s7, 1024, %s49, [#allocation6], 128, 128, 8
    $region33: #{tpu_custom_call.1} parent=1 // pred_fallthru
      _
    // Predicated region
    $region34: #{tpu_custom_call.1} parent=1 // pred_check
      _
    $region35: #{tpu_custom_call.1} parent=1 // pred_check_branch
      %56 = sbr.rel (0) target = $region37
    $region36: #{tpu_custom_call.1} parent=1 // pred_region
      _
    $region37: #{tpu_custom_call.1} parent=1 // pred_fallthru
      _
    // Predicated region
    $region38: #{tpu_custom_call.1} parent=1 // pred_check
      _
    $region39: #{tpu_custom_call.1} parent=1 // pred_check_branch
      %58 = sbr.rel (0) target = $region41
    $region40: #{tpu_custom_call.1} parent=1 // pred_region
      _
    $region41: #{tpu_custom_call.1} parent=1 // pred_fallthru
      _
    // Predicated region
    $region42: #{tpu_custom_call.1} parent=1 // pred_check
      _
    $region43: #{tpu_custom_call.1} parent=1 // pred_check_branch
      %60 = sbr.rel (0) target = $region45
    $region44: #{tpu_custom_call.1} parent=1 // pred_region
      _
    $region45: #{tpu_custom_call.1} parent=1 // pred_fallthru
      _
    // Predicated region
    $region46: #{tpu_custom_call.1} parent=1 // pred_check
      _
    $region47: #{tpu_custom_call.1} parent=1 // pred_check_branch
      %62 = sbr.rel (0) target = $region49
    $region48: #{tpu_custom_call.1} parent=1 // pred_region
      %63 = dma.done [#allocation3], 1024
    $region49: #{tpu_custom_call.1} parent=1 // pred_fallthru
      _
    // Predicated region
    $region50: #{tpu_custom_call.1} parent=1 // pred_check
      _
    $region51: #{tpu_custom_call.1} parent=1 // pred_check_branch
      %65 = sbr.rel (0) target = $region53
    $region52: #{tpu_custom_call.1} parent=1 // pred_region
      %66 = dma.done [#allocation6], 1024
    $region53: #{tpu_custom_call.1} parent=1 // pred_fallthru
      _
    %v67 = vld [vmem:[%s0] sm:$0xff]
    %v68 = vld [vmem:[%s1] sm:$0x7]
    %70 = vset.pattern.permute.xlu0 0
    %71 = vperm.xlu0 %70, %v67
    %v72 = vpop.permute.xlu0 %71
    %v74 = vlaneseq
    %v75 = vshrl.u32 %v74, 7
    %v76 = vsub.s32 0, %v75
    %v77 = vrot.slane %v68, %v76
    %v78 = vmul.f32 %v72, %v77
    %79 = vset.pattern.permute.xlu0 1
    %80 = vperm.xlu0 %79, %v67
    %v81 = vpop.permute.xlu0 %80
    %v83 = vlaneseq
    %v84 = vshrl.u32 %v83, 7
    %v85 = vsub.s32 1, %v84
    %v86 = vrot.slane %v68, %v85
    %v87 = vmul.f32 %v81, %v86
    %v88 = vadd.f32 %v78, %v87
    %89 = vset.pattern.permute.xlu0 2
    %90 = vperm.xlu0 %89, %v67
    %v91 = vpop.permute.xlu0 %90
    %v93 = vlaneseq
    %v94 = vshrl.u32 %v93, 7
    %v95 = vsub.s32 2, %v94
    %v96 = vrot.slane %v68, %v95
    %v97 = vmul.f32 %v91, %v96
    %v98 = vadd.f32 %v88, %v97
    %v99 = vld [vmem:[%s2] sm:$0x1]
    %v101 = vlaneseq
    %v102 = vshrl.u32 %v101, 7
    %v103 = vsub.s32 0, %v102
    %v104 = vrot.slane %v99, %v103
    %v106 = vadd.f32 %v98, %v104
    %v107 = vmax.f32 %v106, 0.0
    %v108 = vld [vmem:[%s3] sm:$0xff]
    %v109 = vld [vmem:[%s3 + $0x8] sm:$0xff]
    %v110 = vld [vmem:[%s3 + $0x10] sm:$0xff]
    %v111 = vld [vmem:[%s3 + $0x18] sm:$0xff]
    %v112 = vld [vmem:[%s3 + $0x20] sm:$0xff]
    %v113 = vld [vmem:[%s3 + $0x28] sm:$0xff]
    %v114 = vld [vmem:[%s3 + $0x30] sm:$0xff]
    %v115 = vld [vmem:[%s3 + $0x38] sm:$0xff]
    %v116 = vld [vmem:[%s4] sm:$0x1]
    %v118 = vlaneseq
    %v119 = vshrl.u32 %v118, 7
    %v120 = vsub.s32 0, %v119
    %v121 = vrot.slane %v116, %v120
    %vm123 = vcmask 523264
    %v125 = vsel %vm123, %v107, 0
    %127 = vmatprep.subr.mxu0 0.0
    %128 = vmatpush1.msra.mxu0 %v108
    %129 = vmatprep.subr.mxu0 0.0
    %130 = vmatpush1.msra.mxu0 %v109
    %131 = vmatprep.subr.mxu0 0.0
    %132 = vmatpush1.msra.mxu0 %v110
    %133 = vmatprep.subr.mxu0 0.0
    %134 = vmatpush1.msra.mxu0 %v111
    %135 = vmatprep.subr.mxu0 0.0
    %136 = vmatpush1.msra.mxu0 %v112
    %137 = vmatprep.subr.mxu0 0.0
    %138 = vmatpush1.msra.mxu0 %v113
    %139 = vmatprep.subr.mxu0 0.0
    %140 = vmatpush1.msra.mxu0 %v114
    %141 = vmatprep.subr.mxu0 0.0
    %142 = vmatpush1.msra.mxu0 %v115
    %143 = vmatprep.subr.mxu0 0.0
    %144 = vmatpush1.msra.mxu0 0.0
    %145 = vmatprep.subr.mxu0 0.0
    %146 = vmatpush1.msra.mxu0 0.0
    %147 = vmatprep.subr.mxu0 0.0
    %148 = vmatpush1.msra.mxu0 0.0
    %149 = vmatprep.subr.mxu0 0.0
    %150 = vmatpush1.msra.mxu0 0.0
    %151 = vmatprep.subr.mxu0 0.0
    %152 = vmatpush1.msra.mxu0 0.0
    %153 = vmatprep.subr.mxu0 0.0
    %154 = vmatpush1.msra.mxu0 0.0
    %155 = vmatprep.subr.mxu0 0.0
    %156 = vmatpush1.msra.mxu0 0.0
    %157 = vmatprep.subr.mxu0 0.0
    %158 = vmatpush1.msra.mxu0 0.0
    %159 = vmatprep.subr.mxu0 0.0
    %160 = vmatpush1.msra.mxu0 0.0
    %161 = vmatprep.subr.mxu0 0.0
    %162 = vmatpush1.msra.mxu0 0.0
    %163 = vmatprep.subr.mxu0 0.0
    %164 = vmatpush1.msra.mxu0 0.0
    %165 = vmatprep.subr.mxu0 0.0
    %166 = vmatpush1.msra.mxu0 0.0
    %167 = vmatprep.subr.mxu0 0.0
    %168 = vmatpush1.msra.mxu0 0.0
    %169 = vmatprep.subr.mxu0 0.0
    %170 = vmatpush1.msra.mxu0 0.0
    %171 = vmatprep.subr.mxu0 0.0
    %172 = vmatpush1.msra.mxu0 0.0
    %173 = vmatprep.subr.mxu0 0.0
    %174 = vmatpush1.msra.mxu0 0.0
    %175 = vmatprep.subr.mxu0 0.0
    %176 = vmatpush1.msra.mxu0 0.0
    %177 = vmatprep.subr.mxu0 0.0
    %178 = vmatpush1.msra.mxu0 0.0
    %179 = vmatprep.subr.mxu0 0.0
    %180 = vmatpush1.msra.mxu0 0.0
    %181 = vmatprep.subr.mxu0 0.0
    %182 = vmatpush1.msra.mxu0 0.0
    %183 = vmatprep.subr.mxu0 0.0
    %184 = vmatpush1.msra.mxu0 0.0
    %185 = vmatprep.subr.mxu0 0.0
    %186 = vmatpush1.msra.mxu0 0.0
    %187 = vmatprep.subr.mxu0 0.0
    %188 = vmatpush1.msra.mxu0 0.0
    %189 = vmatprep.subr.mxu0 0.0
    %190 = vmatpush1.msra.mxu0 0.0
    %191 = vmatprep.mubr.f32.mxu0 0.0
    %192 = vmatmul.mubr.f32.gmra.mrb[0].mxu0 %v125
    %v193 = vpop.f32.mrb[0].mxu0
    %v194 = vadd.f32 %v121, %v193
    %v195 = vpop.f32.mrb[0].mxu0
    %196 = vdwg.mxu0
    %v197 = vmax.f32 %v194, 0.0
    %v198 = vld [vmem:[#allocation2] sm:$0xff]
    %v199 = vld [vmem:[#allocation2 + $0x8] sm:$0xff]
    %v200 = vld [vmem:[#allocation2 + $0x10] sm:$0xff]
    %v201 = vld [vmem:[#allocation2 + $0x18] sm:$0xff]
    %v202 = vld [vmem:[#allocation2 + $0x20] sm:$0xff]
    %v203 = vld [vmem:[#allocation2 + $0x28] sm:$0xff]
    %v204 = vld [vmem:[#allocation2 + $0x30] sm:$0xff]
    %v205 = vld [vmem:[#allocation2 + $0x38] sm:$0xff]
    %v206 = vld [vmem:[%s6] sm:$0x1]
    %v208 = vlaneseq
    %v209 = vshrl.u32 %v208, 7
    %v210 = vsub.s32 0, %v209
    %v211 = vrot.slane %v206, %v210
    %v214 = vsel %vm123, %v197, 0
    %216 = vmatprep.subr.mxu0 0.0
    %217 = vmatpush1.msra.mxu0 %v198
    %218 = vmatprep.subr.mxu0 0.0
    %219 = vmatpush1.msra.mxu0 %v199
    %220 = vmatprep.subr.mxu0 0.0
    %221 = vmatpush1.msra.mxu0 %v200
    %222 = vmatprep.subr.mxu0 0.0
    %223 = vmatpush1.msra.mxu0 %v201
    %224 = vmatprep.subr.mxu0 0.0
    %225 = vmatpush1.msra.mxu0 %v202
    %226 = vmatprep.subr.mxu0 0.0
    %227 = vmatpush1.msra.mxu0 %v203
    %228 = vmatprep.subr.mxu0 0.0
    %229 = vmatpush1.msra.mxu0 %v204
    %230 = vmatprep.subr.mxu0 0.0
    %231 = vmatpush1.msra.mxu0 %v205
    %232 = vmatprep.subr.mxu0 0.0
    %233 = vmatpush1.msra.mxu0 0.0
    %234 = vmatprep.subr.mxu0 0.0
    %235 = vmatpush1.msra.mxu0 0.0
    %236 = vmatprep.subr.mxu0 0.0
    %237 = vmatpush1.msra.mxu0 0.0
    %238 = vmatprep.subr.mxu0 0.0
    %239 = vmatpush1.msra.mxu0 0.0
    %240 = vmatprep.subr.mxu0 0.0
    %241 = vmatpush1.msra.mxu0 0.0
    %242 = vmatprep.subr.mxu0 0.0
    %243 = vmatpush1.msra.mxu0 0.0
    %244 = vmatprep.subr.mxu0 0.0
    %245 = vmatpush1.msra.mxu0 0.0
    %246 = vmatprep.subr.mxu0 0.0
    %247 = vmatpush1.msra.mxu0 0.0
    %248 = vmatprep.subr.mxu0 0.0
    %249 = vmatpush1.msra.mxu0 0.0
    %250 = vmatprep.subr.mxu0 0.0
    %251 = vmatpush1.msra.mxu0 0.0
    %252 = vmatprep.subr.mxu0 0.0
    %253 = vmatpush1.msra.mxu0 0.0
    %254 = vmatprep.subr.mxu0 0.0
    %255 = vmatpush1.msra.mxu0 0.0
    %256 = vmatprep.subr.mxu0 0.0
    %257 = vmatpush1.msra.mxu0 0.0
    %258 = vmatprep.subr.mxu0 0.0
    %259 = vmatpush1.msra.mxu0 0.0
    %260 = vmatprep.subr.mxu0 0.0
    %261 = vmatpush1.msra.mxu0 0.0
    %262 = vmatprep.subr.mxu0 0.0
    %263 = vmatpush1.msra.mxu0 0.0
    %264 = vmatprep.subr.mxu0 0.0
    %265 = vmatpush1.msra.mxu0 0.0
    %266 = vmatprep.subr.mxu0 0.0
    %267 = vmatpush1.msra.mxu0 0.0
    %268 = vmatprep.subr.mxu0 0.0
    %269 = vmatpush1.msra.mxu0 0.0
    %270 = vmatprep.subr.mxu0 0.0
    %271 = vmatpush1.msra.mxu0 0.0
    %272 = vmatprep.subr.mxu0 0.0
    %273 = vmatpush1.msra.mxu0 0.0
    %274 = vmatprep.subr.mxu0 0.0
    %275 = vmatpush1.msra.mxu0 0.0
    %276 = vmatprep.subr.mxu0 0.0
    %277 = vmatpush1.msra.mxu0 0.0
    %278 = vmatprep.subr.mxu0 0.0
    %279 = vmatpush1.msra.mxu0 0.0
    %280 = vmatprep.mubr.f32.mxu0 0.0
    %281 = vmatmul.mubr.f32.gmra.mrb[0].mxu0 %v214
    %v282 = vpop.f32.mrb[0].mxu0
    %v283 = vadd.f32 %v211, %v282
    %v284 = vpop.f32.mrb[0].mxu0
    %285 = vdwg.mxu0
    %v286 = vmax.f32 %v283, 0.0
    %v287 = vld [vmem:[#allocation5] sm:$0xff]
    %v288 = vld [vmem:[#allocation5 + $0x8] sm:$0xff]
    %v289 = vld [vmem:[#allocation5 + $0x10] sm:$0xff]
    %v290 = vld [vmem:[#allocation5 + $0x18] sm:$0xff]
    %v291 = vld [vmem:[#allocation5 + $0x20] sm:$0xff]
    %v292 = vld [vmem:[#allocation5 + $0x28] sm:$0xff]
    %v293 = vld [vmem:[#allocation5 + $0x30] sm:$0xff]
    %v294 = vld [vmem:[#allocation5 + $0x38] sm:$0xff]
    %v295 = vld [vmem:[%s8] sm:$0x1]
    %v297 = vlaneseq
    %v298 = vshrl.u32 %v297, 7
    %v299 = vsub.s32 0, %v298
    %v300 = vrot.slane %v295, %v299
    %v303 = vsel %vm123, %v286, 0
    %305 = vmatprep.subr.mxu0 0.0
    %306 = vmatpush1.msra.mxu0 %v287
    %307 = vmatprep.subr.mxu0 0.0
    %308 = vmatpush1.msra.mxu0 %v288
    %309 = vmatprep.subr.mxu0 0.0
    %310 = vmatpush1.msra.mxu0 %v289
    %311 = vmatprep.subr.mxu0 0.0
    %312 = vmatpush1.msra.mxu0 %v290
    %313 = vmatprep.subr.mxu0 0.0
    %314 = vmatpush1.msra.mxu0 %v291
    %315 = vmatprep.subr.mxu0 0.0
    %316 = vmatpush1.msra.mxu0 %v292
    %317 = vmatprep.subr.mxu0 0.0
    %318 = vmatpush1.msra.mxu0 %v293
    %319 = vmatprep.subr.mxu0 0.0
    %320 = vmatpush1.msra.mxu0 %v294
    %321 = vmatprep.subr.mxu0 0.0
    %322 = vmatpush1.msra.mxu0 0.0
    %323 = vmatprep.subr.mxu0 0.0
    %324 = vmatpush1.msra.mxu0 0.0
    %325 = vmatprep.subr.mxu0 0.0
    %326 = vmatpush1.msra.mxu0 0.0
    %327 = vmatprep.subr.mxu0 0.0
    %328 = vmatpush1.msra.mxu0 0.0
    %329 = vmatprep.subr.mxu0 0.0
    %330 = vmatpush1.msra.mxu0 0.0
    %331 = vmatprep.subr.mxu0 0.0
    %332 = vmatpush1.msra.mxu0 0.0
    %333 = vmatprep.subr.mxu0 0.0
    %334 = vmatpush1.msra.mxu0 0.0
    %335 = vmatprep.subr.mxu0 0.0
    %336 = vmatpush1.msra.mxu0 0.0
    %337 = vmatprep.subr.mxu0 0.0
    %338 = vmatpush1.msra.mxu0 0.0
    %339 = vmatprep.subr.mxu0 0.0
    %340 = vmatpush1.msra.mxu0 0.0
    %341 = vmatprep.subr.mxu0 0.0
    %342 = vmatpush1.msra.mxu0 0.0
    %343 = vmatprep.subr.mxu0 0.0
    %344 = vmatpush1.msra.mxu0 0.0
    %345 = vmatprep.subr.mxu0 0.0
    %346 = vmatpush1.msra.mxu0 0.0
    %347 = vmatprep.subr.mxu0 0.0
    %348 = vmatpush1.msra.mxu0 0.0
    %349 = vmatprep.subr.mxu0 0.0
    %350 = vmatpush1.msra.mxu0 0.0
    %351 = vmatprep.subr.mxu0 0.0
    %352 = vmatpush1.msra.mxu0 0.0
    %353 = vmatprep.subr.mxu0 0.0
    %354 = vmatpush1.msra.mxu0 0.0
    %355 = vmatprep.subr.mxu0 0.0
    %356 = vmatpush1.msra.mxu0 0.0
    %357 = vmatprep.subr.mxu0 0.0
    %358 = vmatpush1.msra.mxu0 0.0
    %359 = vmatprep.subr.mxu0 0.0
    %360 = vmatpush1.msra.mxu0 0.0
    %361 = vmatprep.subr.mxu0 0.0
    %362 = vmatpush1.msra.mxu0 0.0
    %363 = vmatprep.subr.mxu0 0.0
    %364 = vmatpush1.msra.mxu0 0.0
    %365 = vmatprep.subr.mxu0 0.0
    %366 = vmatpush1.msra.mxu0 0.0
    %367 = vmatprep.subr.mxu0 0.0
    %368 = vmatpush1.msra.mxu0 0.0
    %369 = vmatprep.mubr.f32.mxu0 0.0
    %370 = vmatmul.mubr.f32.gmra.mrb[0].mxu0 %v303
    %v371 = vpop.f32.mrb[0].mxu0
    %v372 = vadd.f32 %v300, %v371
    %v373 = vpop.f32.mrb[0].mxu0
    %374 = vdwg.mxu0
    %v375 = vmax.f32 %v372, 0.0
    %v376 = vld [vmem:[%s9] sm:$0xff]
    %v377 = vld [vmem:[%s9 + $0x8] sm:$0xff]
    %v378 = vld [vmem:[%s9 + $0x10] sm:$0xff]
    %v379 = vld [vmem:[%s9 + $0x18] sm:$0xff]
    %v380 = vld [vmem:[%s9 + $0x20] sm:$0xff]
    %v381 = vld [vmem:[%s9 + $0x28] sm:$0xff]
    %v382 = vld [vmem:[%s9 + $0x30] sm:$0xff]
    %v383 = vld [vmem:[%s9 + $0x38] sm:$0xff]
    %v384 = vld [vmem:[%s10] sm:$0x1]
    %v386 = vlaneseq
    %v387 = vshrl.u32 %v386, 7
    %v388 = vsub.s32 0, %v387
    %v389 = vrot.slane %v384, %v388
    %v392 = vsel %vm123, %v375, 0
    %394 = vmatprep.subr.mxu0 0.0
    %395 = vmatpush1.msra.mxu0 %v376
    %396 = vmatprep.subr.mxu0 0.0
    %397 = vmatpush1.msra.mxu0 %v377
    %398 = vmatprep.subr.mxu0 0.0
    %399 = vmatpush1.msra.mxu0 %v378
    %400 = vmatprep.subr.mxu0 0.0
    %401 = vmatpush1.msra.mxu0 %v379
    %402 = vmatprep.subr.mxu0 0.0
    %403 = vmatpush1.msra.mxu0 %v380
    %404 = vmatprep.subr.mxu0 0.0
    %405 = vmatpush1.msra.mxu0 %v381
    %406 = vmatprep.subr.mxu0 0.0
    %407 = vmatpush1.msra.mxu0 %v382
    %408 = vmatprep.subr.mxu0 0.0
    %409 = vmatpush1.msra.mxu0 %v383
    %410 = vmatprep.subr.mxu0 0.0
    %411 = vmatpush1.msra.mxu0 0.0
    %412 = vmatprep.subr.mxu0 0.0
    %413 = vmatpush1.msra.mxu0 0.0
    %414 = vmatprep.subr.mxu0 0.0
    %415 = vmatpush1.msra.mxu0 0.0
    %416 = vmatprep.subr.mxu0 0.0
    %417 = vmatpush1.msra.mxu0 0.0
    %418 = vmatprep.subr.mxu0 0.0
    %419 = vmatpush1.msra.mxu0 0.0
    %420 = vmatprep.subr.mxu0 0.0
    %421 = vmatpush1.msra.mxu0 0.0
    %422 = vmatprep.subr.mxu0 0.0
    %423 = vmatpush1.msra.mxu0 0.0
    %424 = vmatprep.subr.mxu0 0.0
    %425 = vmatpush1.msra.mxu0 0.0
    %426 = vmatprep.subr.mxu0 0.0
    %427 = vmatpush1.msra.mxu0 0.0
    %428 = vmatprep.subr.mxu0 0.0
    %429 = vmatpush1.msra.mxu0 0.0
    %430 = vmatprep.subr.mxu0 0.0
    %431 = vmatpush1.msra.mxu0 0.0
    %432 = vmatprep.subr.mxu0 0.0
    %433 = vmatpush1.msra.mxu0 0.0
    %434 = vmatprep.subr.mxu0 0.0
    %435 = vmatpush1.msra.mxu0 0.0
    %436 = vmatprep.subr.mxu0 0.0
    %437 = vmatpush1.msra.mxu0 0.0
    %438 = vmatprep.subr.mxu0 0.0
    %439 = vmatpush1.msra.mxu0 0.0
    %440 = vmatprep.subr.mxu0 0.0
    %441 = vmatpush1.msra.mxu0 0.0
    %442 = vmatprep.subr.mxu0 0.0
    %443 = vmatpush1.msra.mxu0 0.0
    %444 = vmatprep.subr.mxu0 0.0
    %445 = vmatpush1.msra.mxu0 0.0
    %446 = vmatprep.subr.mxu0 0.0
    %447 = vmatpush1.msra.mxu0 0.0
    %448 = vmatprep.subr.mxu0 0.0
    %449 = vmatpush1.msra.mxu0 0.0
    %450 = vmatprep.subr.mxu0 0.0
    %451 = vmatpush1.msra.mxu0 0.0
    %452 = vmatprep.subr.mxu0 0.0
    %453 = vmatpush1.msra.mxu0 0.0
    %454 = vmatprep.subr.mxu0 0.0
    %455 = vmatpush1.msra.mxu0 0.0
    %456 = vmatprep.subr.mxu0 0.0
    %457 = vmatpush1.msra.mxu0 0.0
    %458 = vmatprep.mubr.f32.mxu0 0.0
    %459 = vmatmul.mubr.f32.gmra.mrb[0].mxu0 %v392
    %v460 = vpop.f32.mrb[0].mxu0
    %v461 = vadd.f32 %v389, %v460
    %v462 = vpop.f32.mrb[0].mxu0
    %463 = vdwg.mxu0
    %vm464 = vcmask 48128
    %465 = vst.msk [vmem:[#allocation7] sm:$0xff] %vm464, %v461
    // Predicated region
    $region54: #{tpu_custom_call.1} parent=1 // pred_check
      _
    $region55: #{tpu_custom_call.1} parent=1 // pred_check_branch
      %467 = sbr.rel (0) target = $region57
    $region56: #{tpu_custom_call.1} parent=1 // pred_region
      %s469 = ssub.s32 128, 128
      %470 = vsyncadd [#allocation4], %s469
      %s472 = sshll.u32 [#allocation7], 4
      %s473 = int_to_ptr.vmem [resolvable:$true] %s472
      %475 = dma.vmem_to_hbm [thread:$0]  %s473, 128, %s11, [#allocation4]
    $region57: #{tpu_custom_call.1} parent=1 // pred_fallthru
      _
    // Predicated region
    $region58: #{tpu_custom_call.1} parent=1 // pred_check
      _
    $region59: #{tpu_custom_call.1} parent=1 // pred_check_branch
      %477 = sbr.rel (0) target = $region61
    $region60: #{tpu_custom_call.1} parent=1 // pred_region
      %478 = dma.done [#allocation4], 128
    $region61: #{tpu_custom_call.1} parent=1 // pred_fallthru
      _
    %479 = vsyncpa [#allocation3], 1
    %480 = vsyncpa [#allocation6], 1
    %481 = vsyncpa [#allocation4], 1

</llo_original>
